<compile_context>
chip_gen: v7x
topology: tpu7x:2x2x1
jax: 0.10.0
libtpu: 0.0.40
codegen_flags: <defaults>
</compile_context>

<pallas_src>
import numpy as np
import jax
import jax.numpy as jnp
from jax.experimental import pallas as pl
from jax.experimental.pallas import tpu as pltpu


# ----------------------- deterministic parameter / basis setup ----------------

def _round_up(x, m):
    return (x + m - 1) // m * m


def _hz_to_mel(f):
    return 2595.0 * np.log10(1.0 + f / 700.0)


def _mel_to_hz(m):
    return 700.0 * (10.0 ** (m / 2595.0) - 1.0)


def make_mel_filterbank(n_fft, n_mels, sr, f_min=0.0, f_max=None):
    """Triangular mel filterbank (F2M-style), shape (n_fft//2+1, n_mels)."""
    if f_max is None:
        f_max = sr / 2.0
    n_freq = n_fft // 2 + 1
    m_pts = np.linspace(_hz_to_mel(f_min), _hz_to_mel(f_max), n_mels + 2)
    f_pts = _mel_to_hz(m_pts)
    bins = np.floor((n_fft + 1) * f_pts / sr).astype(np.int64)
    fb = np.zeros((n_freq, n_mels), dtype=np.float32)
    for m in range(1, n_mels + 1):
        f_l, f_c, f_r = bins[m - 1], bins[m], bins[m + 1]
        for k in range(f_l, f_c):
            if f_c > f_l:
                fb[k, m - 1] = (k - f_l) / float(f_c - f_l)
        for k in range(f_c, f_r):
            if f_r > f_c:
                fb[k, m - 1] = (f_r - k) / float(f_r - f_c)
    return fb


def make_fused_dft_basis(n_fft, k_pad, f_pad):
    """Fused real/imag DFT basis, shape (k_pad, 2*f_pad).

    Rows [0, n_fft) are the window samples (rectangular window); rows beyond
    n_fft are zero (K padded to a multiple of 128 for the MXU).
    Columns [0, n_freq) : cos ; columns [f_pad, f_pad+n_freq) : -sin.
    Padded freq columns are zero so their magnitude is 0.
    """
    n_freq = n_fft // 2 + 1
    n = np.arange(n_fft)[:, None].astype(np.float64)
    k = np.arange(n_freq)[None, :].astype(np.float64)
    ang = 2.0 * np.pi * n * k / n_fft
    basis = np.zeros((k_pad, 2 * f_pad), dtype=np.float32)
    basis[:n_fft, :n_freq] = np.cos(ang)
    basis[:n_fft, f_pad:f_pad + n_freq] = -np.sin(ang)
    return basis


def make_smoother_matrix(tile_t, s):
    """Per-tile IIR smoother as a small lower-triangular matmul.

    W[t, t'] = s * (1-s)^(t-t') for t' <= t, 0 above the diagonal, so that
        M = W @ mel + (1-s)^(t+1) * prev_state
    reproduces M_t = (1-s) M_{t-1} + s mel_t with M_{-1} := prev_state.
    (For the first tile of a batch we set prev_state := mel_0, which gives
     M_0 = mel_0 exactly, matching pcen() with empty=True.)
    """
    t = np.arange(tile_t)
    diff = t[:, None] - t[None, :]
    w = np.where(diff >= 0, s * (1.0 - s) ** np.maximum(diff, 0), 0.0)
    return w.astype(np.float32)


# ------------------------------- Pallas kernel --------------------------------

def make_pcen_kernel(f_pad, tile_t, eps, s, alpha, delta, r, last_tile, last_row):
    use_sqrt = abs(float(r) - 0.5) < 1e-12
    delta_pow_r = float(delta) ** float(r)
    eps = float(eps)
    alpha = float(alpha)
    delta = float(delta)
    r = float(r)
    log_one_minus_s = float(np.log(1.0 - float(s)))

    def kernel(frames_ref, basis_ref, fb_ref, w_ref, o_ref, ls_ref, state_ref):
        t_tile = pl.program_id(1)

        # --- STFT magnitude: one fused, lane-dense bf16 MXU matmul (cos | -sin) ---
        spec = jnp.dot(frames_ref[0], basis_ref[...],
                       preferred_element_type=jnp.float32)          # (tile_t, 2*Fp) f32
        re = spec[:, :f_pad]                                         # 128-aligned slices
        im = spec[:, f_pad:]
        mag = jnp.sqrt(re * re + im * im)                            # f32

        # --- mel projection (bf16 MXU, f32 accumulate) ---
        mel = jnp.dot(mag.astype(fb_ref.dtype), fb_ref[...],
                      preferred_element_type=jnp.float32)            # (tile_t, Mp) f32

        # --- streaming IIR smoother, tiled, with a carried per-batch state ---
        # First tile of each batch: "previous state" := mel[0]  =>  M[0] = mel[0].
        @pl.when(t_tile == 0)
        def _():
            state_ref[...] = mel[0:1, :]

        prev = state_ref[...]                                        # (1, Mp) f32
        # decay[t] = (1-s)^(t+1), computed on the EUP (cheap, no extra input)
        t_idx = jax.lax.broadcasted_iota(jnp.int32, (tile_t, 1), 0).astype(jnp.float32)
        decay = jnp.exp((t_idx + 1.0) * log_one_minus_s)             # (tile_t, 1)
        M = (jnp.dot(w_ref[...], mel, preferred_element_type=jnp.float32)
             + decay * prev)                                         # (tile_t, Mp) f32
        state_ref[...] = M[-1:, :]                                   # carry to next tile

        # --- PCEN: (mel / (M+eps)^alpha + delta)^r - delta^r  (EUP-friendly) ---
        inv_smooth = jnp.exp((-alpha) * jnp.log(M + eps))
        base = mel * inv_smooth + delta
        if use_sqrt:
            out = jnp.sqrt(base) - delta_pow_r
        else:
            out = jnp.exp(r * jnp.log(base)) - delta_pow_r
        o_ref[0] = out.astype(o_ref.dtype)                           # lane-dense

        # last_state is M at global frame T-1; it lives in this tile -> free.
        @pl.when(t_tile == last_tile)
        def _():
            ls_ref[0] = M[last_row:last_row + 1, :].astype(ls_ref.dtype)

    return kernel


# --------------------------------- wrapper ------------------------------------

def streaming_pcen_transform(x, *, n_fft, hop_length, n_mels, sr,
                             f_min=0.0, f_max=None,
                             eps=1e-6, s=0.025, alpha=0.98, delta=2.0, r=0.5,
                             tile_t=None):
    """Equivalent of StreamingPCENTransform.forward (trainable=False, fresh state).

    Returns (pcen (B, T, n_mels), last_state (B, 1, n_mels)).
    """
    B, L = x.shape
    n_freq = n_fft // 2 + 1
    pad = n_fft // 2

    # torch.stft(center=True) reflect padding + framing (glue, pure indexing).
    # TODO(synk): on v5e, frame inside the kernel from the padded signal (strided
    # pl.ds reads from a VMEM signal tile) to avoid the n_fft/hop HBM duplication.
    xp = jnp.pad(x.astype(jnp.float32), ((0, 0), (pad, pad)), mode="reflect")
    T = 1 + (L + 2 * pad - n_fft) // hop_length

    if tile_t is None:
        # Multiple of 16 (bf16 sublane packing); large tiles amortize grid overhead.
        tile_t = min(_round_up(T, 16), 256)
    num_t_tiles = -(-T // tile_t)
    t_pad = num_t_tiles * tile_t

    k_pad = _round_up(n_fft, 128)      # MXU K alignment (helps v5e small-FFT configs)
    f_pad = _round_up(n_freq, 128)
    m_pad = _round_up(n_mels, 128)

    idx = np.arange(T)[:, None] * hop_length + np.arange(n_fft)[None, :]
    frames = xp[:, idx]                                              # (B, T, n_fft)
    frames = jnp.pad(frames, ((0, 0), (0, t_pad - T), (0, k_pad - n_fft)))
    frames = frames.astype(jnp.bfloat16)                             # (B, t_pad, k_pad)

    basis = jnp.asarray(make_fused_dft_basis(n_fft, k_pad, f_pad), jnp.bfloat16)
    fb_np = np.zeros((f_pad, m_pad), dtype=np.float32)
    fb_np[:n_freq, :n_mels] = make_mel_filterbank(n_fft, n_mels, sr, f_min, f_max)
    fb = jnp.asarray(fb_np, jnp.bfloat16)
    w = jnp.asarray(make_smoother_matrix(tile_t, s))   # f32: tiny, keeps IIR carry exact

    last_tile = (T - 1) // tile_t
    last_row = (T - 1) % tile_t
    kernel = make_pcen_kernel(f_pad, tile_t, eps, s, alpha, delta, r,
                              last_tile, last_row)

    out_pad, ls_pad = pl.pallas_call(
        kernel,
        out_shape=(
            jax.ShapeDtypeStruct((B, t_pad, m_pad), jnp.float32),
            jax.ShapeDtypeStruct((B, 1, m_pad), jnp.float32),
        ),
        grid_spec=pltpu.PrefetchScalarGridSpec(
            num_scalar_prefetch=0,
            grid=(B, num_t_tiles),
            in_specs=[
                pl.BlockSpec((1, tile_t, k_pad), lambda b, t: (b, t, 0)),   # frames tile
                pl.BlockSpec((k_pad, 2 * f_pad), lambda b, t: (0, 0)),      # DFT basis (resident)
                pl.BlockSpec((f_pad, m_pad), lambda b, t: (0, 0)),          # mel fb (resident)
                pl.BlockSpec((tile_t, tile_t), lambda b, t: (0, 0)),        # smoother W (resident)
            ],
            out_specs=(
                pl.BlockSpec((1, tile_t, m_pad), lambda b, t: (b, t, 0)),   # pcen tile
                pl.BlockSpec((1, 1, m_pad), lambda b, t: (b, 0, 0)),        # last_state per batch
            ),
            scratch_shapes=[pltpu.VMEM((1, m_pad), jnp.float32)],           # carried IIR state
        ),
        compiler_params=pltpu.CompilerParams(
            # batch axis is independent (shards across v7x's 2 TCs); the T axis
            # carries the IIR state -> must stay sequential.
            dimension_semantics=("parallel", "arbitrary")),
    )(frames, basis, fb, w)

    out = out_pad[:, :T, :n_mels]
    last_state = ls_pad[:, :, :n_mels]
    return out, last_state


# ------------------------------- pure-numpy reference -------------------------

def _reference(x_np, n_fft, hop, n_mels, sr, eps, s, alpha, delta, r):
    pad = n_fft // 2
    xp = np.pad(x_np.astype(np.float64), ((0, 0), (pad, pad)), mode="reflect")
    T = 1 + (x_np.shape[1] + 2 * pad - n_fft) // hop
    idx = np.arange(T)[:, None] * hop + np.arange(n_fft)[None, :]
    frames = xp[:, idx]                                              # (B, T, n_fft)
    n_freq = n_fft // 2 + 1
    n = np.arange(n_fft)[:, None].astype(np.float64)
    k = np.arange(n_freq)[None, :].astype(np.float64)
    ang = 2.0 * np.pi * n * k / n_fft
    re = frames @ np.cos(ang)
    im = frames @ (-np.sin(ang))
    mag = np.sqrt(re * re + im * im)
    fb = make_mel_filterbank(n_fft, n_mels, sr).astype(np.float64)
    mel = mag @ fb                                                   # (B, T, n_mels)
    M = np.zeros_like(mel)
    M[:, 0] = mel[:, 0]
    for t in range(1, T):
        M[:, t] = (1.0 - s) * M[:, t - 1] + s * mel[:, t]
    out = (mel / (M + eps) ** alpha + delta) ** r - delta ** r
    return out.astype(np.float32), M[:, -1:].astype(np.float32)


# ----------------------------------- main --------------------------------------

if __name__ == "__main__":
    key = jax.random.PRNGKey(0)
    B, L = 2, 240
    n_fft, hop, n_mels, sr = 64, 16, 8, 16000
    x = jax.random.normal(key, (B, L), dtype=jnp.float32)

    out, last_state = streaming_pcen_transform(
        x, n_fft=n_fft, hop_length=hop, n_mels=n_mels, sr=sr)
    out = jax.block_until_ready(out)
    last_state = jax.block_until_ready(last_state)

    ref_out, ref_ls = _reference(np.asarray(x), n_fft, hop, n_mels, sr,
                                 1e-6, 0.025, 0.98, 2.0, 0.5)
    # bf16 MXU operands (f32 accumulate) -> slightly looser tolerance than pure-f32.
    np.testing.assert_allclose(np.asarray(out), ref_out, rtol=3e-2, atol=5e-3)
    np.testing.assert_allclose(np.asarray(last_state), ref_ls, rtol=3e-2, atol=5e-3)

    print("KERNEL_OK")
</pallas_src>

<mosaic_0001>
module attributes {stable_mosaic.version = 11 : i64} {
  func.func @kernel(%arg0: i32, %arg1: i32, %arg2: memref<1x16x128xbf16, #tpu.memory_space<vmem>>, %arg3: memref<128x256xbf16, #tpu.memory_space<vmem>>, %arg4: memref<128x128xbf16, #tpu.memory_space<vmem>>, %arg5: memref<16x16xf32, #tpu.memory_space<vmem>>, %arg6: memref<1x16x128xf32, #tpu.memory_space<vmem>>, %arg7: memref<1x1x128xf32, #tpu.memory_space<vmem>>, %arg8: memref<1x128xf32, #tpu.memory_space<vmem>>) attributes {dimension_semantics = [#tpu.dimension_semantics<parallel>, #tpu.dimension_semantics<arbitrary>], iteration_bounds = array<i64: 2, 1>, scalar_prefetch = 0 : i64, scratch_operands = 1 : i64, tpu.core_type = #tpu.core_type<tc>, window_params = [{transform_indices = @transform_0, window_bounds = array<i64: 1, 16, 128>}, {pipeline_mode = #tpu.pipeline_mode<synchronous>, transform_indices = @transform_1, window_bounds = array<i64: 128, 256>}, {pipeline_mode = #tpu.pipeline_mode<synchronous>, transform_indices = @transform_2, window_bounds = array<i64: 128, 128>}, {pipeline_mode = #tpu.pipeline_mode<synchronous>, transform_indices = @transform_3, window_bounds = array<i64: 16, 16>}, {transform_indices = @transform_4, window_bounds = array<i64: 1, 16, 128>}, {transform_indices = @transform_5, window_bounds = array<i64: 1, 1, 128>}]} {
    %c0 = arith.constant 0 : index
    %c0_0 = arith.constant 0 : index
    %c0_1 = arith.constant 0 : index
    %0 = vector.load %arg2[%c0, %c0_0, %c0_1] : memref<1x16x128xbf16, #tpu.memory_space<vmem>>, vector<1x16x128xbf16>
    %1 = vector.shape_cast %0 : vector<1x16x128xbf16> to vector<16x128xbf16>
    %c0_2 = arith.constant 0 : index
    %c0_3 = arith.constant 0 : index
    %2 = vector.load %arg3[%c0_2, %c0_3] : memref<128x256xbf16, #tpu.memory_space<vmem>>, vector<128x256xbf16>
    %cst = arith.constant dense<0.000000e+00> : vector<16x256xf32>
    %3 = tpu.matmul %1, %2, %cst {dimension_numbers = #tpu.dot_dimension_numbers<[1], [0], [0], [1], [0, 0, 1, 1], [], []>} : vector<16x128xbf16>, vector<128x256xbf16>, vector<16x256xf32> -> vector<16x256xf32>
    %4 = vector.extract_strided_slice %3 {offsets = [0, 0], sizes = [16, 128], strides = [1, 1]} : vector<16x256xf32> to vector<16x128xf32>
    %5 = vector.extract_strided_slice %3 {offsets = [0, 128], sizes = [16, 128], strides = [1, 1]} : vector<16x256xf32> to vector<16x128xf32>
    %6 = arith.mulf %4, %4 : vector<16x128xf32>
    %7 = arith.mulf %5, %5 : vector<16x128xf32>
    %8 = arith.addf %6, %7 : vector<16x128xf32>
    %9 = math.sqrt %8 : vector<16x128xf32>
    %10 = arith.truncf %9 : vector<16x128xf32> to vector<16x128xbf16>
    %c0_4 = arith.constant 0 : index
    %c0_5 = arith.constant 0 : index
    %11 = vector.load %arg4[%c0_4, %c0_5] : memref<128x128xbf16, #tpu.memory_space<vmem>>, vector<128x128xbf16>
    %cst_6 = arith.constant dense<0.000000e+00> : vector<16x128xf32>
    %12 = tpu.matmul %10, %11, %cst_6 {dimension_numbers = #tpu.dot_dimension_numbers<[1], [0], [0], [1], [0, 0, 1, 1], [], []>} : vector<16x128xbf16>, vector<128x128xbf16>, vector<16x128xf32> -> vector<16x128xf32>
    %c0_i32 = arith.constant 0 : i32
    %13 = arith.cmpi eq, %arg1, %c0_i32 : i32
    %14 = arith.extui %13 : i1 to i32
    %c0_i32_7 = arith.constant 0 : i32
    %15 = arith.cmpi ne, %14, %c0_i32_7 : i32
    scf.if %15 {
      %50 = vector.extract_strided_slice %12 {offsets = [0, 0], sizes = [1, 128], strides = [1, 1]} : vector<16x128xf32> to vector<1x128xf32>
      %c0_26 = arith.constant 0 : index
      %c0_27 = arith.constant 0 : index
      %51 = vector.load %arg8[%c0_26, %c0_27] : memref<1x128xf32, #tpu.memory_space<vmem>>, vector<1x128xf32>
      tpu.vector_store %arg8[%c0_26, %c0_27], %50 {strides = array<i32>} : memref<1x128xf32, #tpu.memory_space<vmem>>, vector<1x128xf32>,
    } else {
    }
    %c0_8 = arith.constant 0 : index
    %c0_9 = arith.constant 0 : index
    %16 = vector.load %arg8[%c0_8, %c0_9] : memref<1x128xf32, #tpu.memory_space<vmem>>, vector<1x128xf32>
    %17 = tpu.iota {dimensions = array<i32: 0>} : vector<16x1xi32>
    %18 = arith.sitofp %17 : vector<16x1xi32> to vector<16x1xf32>
    %cst_10 = arith.constant 1.000000e+00 : f32
    %19 = vector.broadcast %cst_10 : f32 to vector<16x1xf32>
    %20 = arith.addf %18, %19 : vector<16x1xf32>
    %cst_11 = arith.constant -0.0253178086 : f32
    %21 = vector.broadcast %cst_11 : f32 to vector<16x1xf32>
    %22 = arith.mulf %20, %21 : vector<16x1xf32>
    %23 = math.exp %22 : vector<16x1xf32>
    %c0_12 = arith.constant 0 : index
    %c0_13 = arith.constant 0 : index
    %24 = vector.load %arg5[%c0_12, %c0_13] : memref<16x16xf32, #tpu.memory_space<vmem>>, vector<16x16xf32>
    %cst_14 = arith.constant dense<0.000000e+00> : vector<16x128xf32>
    %25 = tpu.matmul %24, %12, %cst_14 {dimension_numbers = #tpu.dot_dimension_numbers<[1], [0], [0], [1], [0, 0, 1, 1], [], []>} : vector<16x16xf32>, vector<16x128xf32>, vector<16x128xf32> -> vector<16x128xf32>
    %26 = vector.broadcast %23 : vector<16x1xf32> to vector<16x128xf32>
    %27 = vector.broadcast %16 : vector<1x128xf32> to vector<16x128xf32>
    %28 = arith.mulf %26, %27 : vector<16x128xf32>
    %29 = arith.addf %25, %28 : vector<16x128xf32>
    %30 = vector.extract_strided_slice %29 {offsets = [15, 0], sizes = [1, 128], strides = [1, 1]} : vector<16x128xf32> to vector<1x128xf32>
    %c0_15 = arith.constant 0 : index
    %c0_16 = arith.constant 0 : index
    %31 = vector.load %arg8[%c0_15, %c0_16] : memref<1x128xf32, #tpu.memory_space<vmem>>, vector<1x128xf32>
    tpu.vector_store %arg8[%c0_15, %c0_16], %30 {strides = array<i32>} : memref<1x128xf32, #tpu.memory_space<vmem>>, vector<1x128xf32>,
    %cst_17 = arith.constant 9.99999997E-7 : f32
    %32 = vector.broadcast %cst_17 : f32 to vector<16x128xf32>
    %33 = arith.addf %29, %32 : vector<16x128xf32>
    %34 = math.log %33 : vector<16x128xf32>
    %cst_18 = arith.constant -9.800000e-01 : f32
    %35 = vector.broadcast %cst_18 : f32 to vector<16x128xf32>
    %36 = arith.mulf %35, %34 : vector<16x128xf32>
    %37 = math.exp %36 : vector<16x128xf32>
    %38 = arith.mulf %12, %37 : vector<16x128xf32>
    %cst_19 = arith.constant 2.000000e+00 : f32
    %39 = vector.broadcast %cst_19 : f32 to vector<16x128xf32>
    %40 = arith.addf %38, %39 : vector<16x128xf32>
    %41 = math.sqrt %40 : vector<16x128xf32>
    %cst_20 = arith.constant 1.41421354 : f32
    %42 = vector.broadcast %cst_20 : f32 to vector<16x128xf32>
    %43 = arith.subf %41, %42 : vector<16x128xf32>
    %c0_21 = arith.constant 0 : index
    %c0_22 = arith.constant 0 : index
    %c0_23 = arith.constant 0 : index
    %44 = vector.load %arg6[%c0_21, %c0_22, %c0_23] : memref<1x16x128xf32, #tpu.memory_space<vmem>>, vector<1x16x128xf32>
    %45 = vector.shape_cast %44 : vector<1x16x128xf32> to vector<16x128xf32>
    %46 = vector.shape_cast %43 : vector<16x128xf32> to vector<1x16x128xf32>
    tpu.vector_store %arg6[%c0_21, %c0_22, %c0_23], %46 {strides = array<i32>} : memref<1x16x128xf32, #tpu.memory_space<vmem>>, vector<1x16x128xf32>,
    %c0_i32_24 = arith.constant 0 : i32
    %47 = arith.cmpi eq, %arg1, %c0_i32_24 : i32
    %48 = arith.extui %47 : i1 to i32
    %c0_i32_25 = arith.constant 0 : i32
    %49 = arith.cmpi ne, %48, %c0_i32_25 : i32
    scf.if %49 {
      %50 = vector.extract_strided_slice %29 {offsets = [15, 0], sizes = [1, 128], strides = [1, 1]} : vector<16x128xf32> to vector<1x128xf32>
      %c0_26 = arith.constant 0 : index
      %c0_27 = arith.constant 0 : index
      %c0_28 = arith.constant 0 : index
      %51 = vector.load %arg7[%c0_26, %c0_27, %c0_28] : memref<1x1x128xf32, #tpu.memory_space<vmem>>, vector<1x1x128xf32>
      %52 = vector.shape_cast %51 : vector<1x1x128xf32> to vector<1x128xf32>
      %53 = vector.shape_cast %50 : vector<1x128xf32> to vector<1x1x128xf32>
      tpu.vector_store %arg7[%c0_26, %c0_27, %c0_28], %53 {strides = array<i32>} : memref<1x1x128xf32, #tpu.memory_space<vmem>>, vector<1x1x128xf32>,
    } else {
    }
    return
  }
  func.func @transform_0(%arg0: i32, %arg1: i32) -> (i32, i32, i32) {
    %c0_i32 = arith.constant 0 : i32
    %c0_i32_0 = arith.constant 0 : i32
    return %arg0, %arg1, %c0_i32 : i32, i32, i32
  }
  func.func @transform_1(%arg0: i32, %arg1: i32) -> (i32, i32) {
    %c0_i32 = arith.constant 0 : i32
    %c0_i32_0 = arith.constant 0 : i32
    %c0_i32_1 = arith.constant 0 : i32
    return %c0_i32, %c0_i32_0 : i32, i32
  }
  func.func @transform_2(%arg0: i32, %arg1: i32) -> (i32, i32) {
    %c0_i32 = arith.constant 0 : i32
    %c0_i32_0 = arith.constant 0 : i32
    %c0_i32_1 = arith.constant 0 : i32
    return %c0_i32, %c0_i32_0 : i32, i32
  }
  func.func @transform_3(%arg0: i32, %arg1: i32) -> (i32, i32) {
    %c0_i32 = arith.constant 0 : i32
    %c0_i32_0 = arith.constant 0 : i32
    %c0_i32_1 = arith.constant 0 : i32
    return %c0_i32, %c0_i32_0 : i32, i32
  }
  func.func @transform_4(%arg0: i32, %arg1: i32) -> (i32, i32, i32) {
    %c0_i32 = arith.constant 0 : i32
    %c0_i32_0 = arith.constant 0 : i32
    return %arg0, %arg1, %c0_i32 : i32, i32, i32
  }
  func.func @transform_5(%arg0: i32, %arg1: i32) -> (i32, i32, i32) {
    %c0_i32 = arith.constant 0 : i32
    %c0_i32_0 = arith.constant 0 : i32
    %c0_i32_1 = arith.constant 0 : i32
    return %arg0, %c0_i32, %c0_i32_0 : i32, i32, i32
  }
}

</mosaic_0001>

<llo_original>
// kernel: tpu_custom_call.1
$region0: #{tpu_custom_call.1}
  #allocation0 [shape = 'u32[]', space=smem, size = 0x4, offset = 0x4, fixed_abs, tag = 'smem constant byte address 0x4 - core index']
  #allocation1 [shape = 'u32[144,128]{1,0:T(1,128)}', space=vmem, size = 0x12000, scoped, tag = 'internal scratch']
  #allocation2 [shape = 'f32[1,128]{1,0:T(1,128)}', space=vmem, size = 0x200, scoped, tag = 'scratch operand']
  %s0 = inlined_call_operand.hbm [shape: bf16[2,16,128], index: 0, kind: input, shape index: {}]
  %s1 = inlined_call_operand.hbm [shape: bf16[128,256], index: 1, kind: input, shape index: {}]
  %s2 = inlined_call_operand.hbm [shape: bf16[128,128], index: 2, kind: input, shape index: {}]
  %s3 = inlined_call_operand.hbm [shape: f32[16,16], index: 3, kind: input, shape index: {}]
  %s4 = inlined_call_operand.hbm [shape: f32[2,16,128], index: 4, kind: output, shape index: {0}]
  %s5 = inlined_call_operand.hbm [shape: f32[2,1,128], index: 5, kind: output, shape index: {1}]
  %6 = xla_tuple %s4, %s5
  %s7 = sld [smem:[#allocation0]]
  $region81: #{tpu_custom_call.1} parent=0
    _
  %s9 = ssub.s32 1, %s7
  %s10 = scalar_select 0, %s9, %s7
  $region1: #{tpu_custom_call.1} parent=0
    #allocation3 [shape = 'u8[8192]{0}', space=vmem, size = 0x2000, scoped, tag = 'input window, operand 0']
    #allocation4 [shape = 's32[2]{0}', space=sflag, size = 0x8, scoped, tag = 'scoped memory for tpu_custom_call.1']
    #allocation5 [shape = 's32[2]{0}', space=sflag, size = 0x8, scoped, tag = 'scoped memory for tpu_custom_call.1']
    #allocation6 [shape = 'u8[65536]{0}', space=vmem, size = 0x10000, scoped, tag = 'input window, operand 1, single buffered']
    #allocation7 [shape = 's32[1]{0}', space=sflag, size = 0x4, scoped, tag = 'scoped memory for tpu_custom_call.1']
    #allocation8 [shape = 'u8[32768]{0}', space=vmem, size = 0x8000, scoped, tag = 'input window, operand 2, single buffered']
    #allocation9 [shape = 'u8[8192]{0}', space=vmem, size = 0x2000, scoped, tag = 'input window, operand 3, single buffered']
    #allocation10 [shape = 's32[1]{0}', space=sflag, size = 0x4, scoped, tag = 'scoped memory for tpu_custom_call.1']
    #allocation11 [shape = 'u8[16384]{0}', space=vmem, size = 0x4000, scoped, tag = 'output window, operand 0']
    #allocation12 [shape = 'u8[1024]{0}', space=vmem, size = 0x400, scoped, tag = 'output window, operand 1']
    #allocation13 [shape = 's32[2]{0}', space=sflag, size = 0x8, scoped, tag = 'scoped memory for tpu_custom_call.1']
    %11 = vsyncpa [#allocation4], 0
    %s12 = scalar_lea.sflag [#allocation4], 1
    %13 = vsyncpa %s12, 0
    %14 = vsyncpa [#allocation7], 0
    %15 = vsyncpa [#allocation10], 0
    %16 = vsyncpa [#allocation5], 0
    %s17 = scalar_lea.sflag [#allocation5], 1
    %18 = vsyncpa %s17, 0
    %19 = vsyncpa [#allocation13], 0
    %s20 = scalar_lea.sflag [#allocation13], 1
    %21 = vsyncpa %s20, 0
    loop: start=0, step=1, limit=4
    $region2: #{tpu_custom_call.1} parent=1 // loop_pre_header
      _
    $region3: #{tpu_custom_call.1} parent=1 // loop_header
      %s23 = sphi 0, %s27
      %p24 = scmp.ge.s32.totalorder %s23, 4
      %s30 = sphi 0, %s42
      %s31 = sphi 0, %s38
      %s32 = sphi 0, %s30
      %s33 = sphi 0, %s31
      %s34 = sphi 0, %s32
      %s35 = sphi 0, %s33
      %s47 = sphi 0, %s49
      %s50 = sphi 0, %s47
      %s51 = sphi 0, %s50
      %s67 = sphi 0, %s51
      %s71 = sphi 0, %s71
      %s73 = sphi 0, %s71
      %s74 = sphi 0, %s73
      %s88 = sphi 0, %s74
      %s92 = sphi 0, %s92
      %s94 = sphi 0, %s92
      %s95 = sphi 0, %s94
      %s109 = sphi 0, %s95
      %s113 = sphi 0, %s113
      %s115 = sphi 0, %s113
      %s116 = sphi 0, %s115
      %s130 = sphi 0, %s116
      %s138 = sphi 0, %s140
      %s141 = sphi 0, %s138
      %s142 = sphi 0, %s141
      %s158 = sphi 0, %s142
      %s164 = sphi 0, %s166
      %s167 = sphi 0, %s164
      %s168 = sphi 0, %s167
      %s184 = sphi 0, %s168
    $region4: #{tpu_custom_call.1} parent=1 // loop_header_branch
      %26 = sbr.rel (%p24) target = $region8
    $region5: #{tpu_custom_call.1} parent=1 // loop_body
      %s28 = ssub.s32 %s23, 1
      %s29 = ssub.s32 %s23, 2
      %s36 = sadd.s32 1, %s31
      %p37 = scmp.ge.s32.totalorder %s36, 1
      %s38 = scalar_select %p37, 0, %s36
      %s39 = sadd.s32 1, %s30
      %s40 = scalar_select %p37, %s39, %s30
      %p41 = scmp.ge.s32.totalorder %s40, 2
      %s42 = scalar_select %p41, 0, %s40
      %s43 = ssub.s32 %s30, %s42
      %s44 = ssub.s32 %s31, %s38
      %s45 = sor.u32 %s43, %s44
      %p46 = scmp.eq.s32.totalorder %s45, 0
      %s48 = sadd.s32 %s47, 1
      %s49 = scalar_select %p46, %s47, %s48
      %p52 = pneg %p46
      %p53 = scmp.eq.s32.totalorder %s23, 1
      %p54 = por %p52, %p53
      %p55 = scmp.ne.s32.totalorder %s47, %s50
      %p56 = scmp.eq.s32.totalorder %s23, 0
      %p57 = por %p55, %p56
      %p58 = scmp.ne.s32.totalorder %s47, %s50
      %p59 = scmp.eq.s32.totalorder %s28, 1
      %p60 = por %p58, %p59
      %p61 = scmp.ne.s32.totalorder %s50, %s51
      %p62 = scmp.eq.s32.totalorder %s28, 0
      %p63 = por %p61, %p62
      %p64 = scmp.ne.s32.totalorder %s50, %s51
      %p65 = scmp.eq.s32.totalorder %s29, 1
      %p66 = por %p64, %p65
      %p68 = scmp.ne.s32.totalorder %s51, %s67
      %p69 = scmp.eq.s32.totalorder %s29, 0
      %p70 = por %p68, %p69
      %s72 = sadd.s32 %s71, 1
      %p75 = scmp.eq.s32.totalorder %s23, 1
      %p76 = scmp.ne.s32.totalorder %s71, %s73
      %p77 = scmp.eq.s32.totalorder %s23, 0
      %p78 = por %p76, %p77
      %p79 = scmp.ne.s32.totalorder %s71, %s73
      %p80 = scmp.eq.s32.totalorder %s28, 1
      %p81 = por %p79, %p80
      %p82 = scmp.ne.s32.totalorder %s73, %s74
      %p83 = scmp.eq.s32.totalorder %s28, 0
      %p84 = por %p82, %p83
      %p85 = scmp.ne.s32.totalorder %s73, %s74
      %p86 = scmp.eq.s32.totalorder %s29, 1
      %p87 = por %p85, %p86
      %p89 = scmp.ne.s32.totalorder %s74, %s88
      %p90 = scmp.eq.s32.totalorder %s29, 0
      %p91 = por %p89, %p90
      %s93 = sadd.s32 %s92, 1
      %p96 = scmp.eq.s32.totalorder %s23, 1
      %p97 = scmp.ne.s32.totalorder %s92, %s94
      %p98 = scmp.eq.s32.totalorder %s23, 0
      %p99 = por %p97, %p98
      %p100 = scmp.ne.s32.totalorder %s92, %s94
      %p101 = scmp.eq.s32.totalorder %s28, 1
      %p102 = por %p100, %p101
      %p103 = scmp.ne.s32.totalorder %s94, %s95
      %p104 = scmp.eq.s32.totalorder %s28, 0
      %p105 = por %p103, %p104
      %p106 = scmp.ne.s32.totalorder %s94, %s95
      %p107 = scmp.eq.s32.totalorder %s29, 1
      %p108 = por %p106, %p107
      %p110 = scmp.ne.s32.totalorder %s95, %s109
      %p111 = scmp.eq.s32.totalorder %s29, 0
      %p112 = por %p110, %p111
      %s114 = sadd.s32 %s113, 1
      %p117 = scmp.eq.s32.totalorder %s23, 1
      %p118 = scmp.ne.s32.totalorder %s113, %s115
      %p119 = scmp.eq.s32.totalorder %s23, 0
      %p120 = por %p118, %p119
      %p121 = scmp.ne.s32.totalorder %s113, %s115
      %p122 = scmp.eq.s32.totalorder %s28, 1
      %p123 = por %p121, %p122
      %p124 = scmp.ne.s32.totalorder %s115, %s116
      %p125 = scmp.eq.s32.totalorder %s28, 0
      %p126 = por %p124, %p125
      %p127 = scmp.ne.s32.totalorder %s115, %s116
      %p128 = scmp.eq.s32.totalorder %s29, 1
      %p129 = por %p127, %p128
      %p131 = scmp.ne.s32.totalorder %s116, %s130
      %p132 = scmp.eq.s32.totalorder %s29, 0
      %p133 = por %p131, %p132
      %s134 = ssub.s32 %s30, %s42
      %s135 = ssub.s32 %s31, %s38
      %s136 = sor.u32 %s134, %s135
      %p137 = scmp.eq.s32.totalorder %s136, 0
      %s139 = sadd.s32 %s138, 1
      %s140 = scalar_select %p137, %s138, %s139
      %p143 = pneg %p137
      %p144 = scmp.eq.s32.totalorder %s23, 1
      %p145 = por %p143, %p144
      %p146 = scmp.ne.s32.totalorder %s138, %s141
      %p147 = scmp.eq.s32.totalorder %s23, 0
      %p148 = por %p146, %p147
      %p149 = scmp.ne.s32.totalorder %s138, %s141
      %p150 = scmp.eq.s32.totalorder %s28, 1
      %p151 = por %p149, %p150
      %p152 = scmp.ne.s32.totalorder %s141, %s142
      %p153 = scmp.eq.s32.totalorder %s28, 0
      %p154 = por %p152, %p153
      %p155 = scmp.ne.s32.totalorder %s141, %s142
      %p156 = scmp.eq.s32.totalorder %s29, 1
      %p157 = por %p155, %p156
      %p159 = scmp.ne.s32.totalorder %s142, %s158
      %p160 = scmp.eq.s32.totalorder %s29, 0
      %p161 = por %p159, %p160
      %s162 = ssub.s32 %s30, %s42
      %p163 = scmp.eq.s32.totalorder %s162, 0
      %s165 = sadd.s32 %s164, 1
      %s166 = scalar_select %p163, %s164, %s165
      %p169 = pneg %p163
      %p170 = scmp.eq.s32.totalorder %s23, 1
      %p171 = por %p169, %p170
      %p172 = scmp.ne.s32.totalorder %s164, %s167
      %p173 = scmp.eq.s32.totalorder %s23, 0
      %p174 = por %p172, %p173
      %p175 = scmp.ne.s32.totalorder %s164, %s167
      %p176 = scmp.eq.s32.totalorder %s28, 1
      %p177 = por %p175, %p176
      %p178 = scmp.ne.s32.totalorder %s167, %s168
      %p179 = scmp.eq.s32.totalorder %s28, 0
      %p180 = por %p178, %p179
      %p181 = scmp.ne.s32.totalorder %s167, %s168
      %p182 = scmp.eq.s32.totalorder %s29, 1
      %p183 = por %p181, %p182
      %p185 = scmp.ne.s32.totalorder %s168, %s184
      %p186 = scmp.eq.s32.totalorder %s29, 0
      %p187 = por %p185, %p186
      %p188 = scmp.le.s32.totalorder 1, %s23
      %p189 = scmp.lt.s32.totalorder %s23, 3
      %p190 = pnand %p188, %p189
      %p191 = pneg %p190
      // Predicated region
      $region9: #{tpu_custom_call.1} parent=5 // pred_check
        _
      $region10: #{tpu_custom_call.1} parent=5 // pred_check_branch
        %193 = sbr.rel (%p190) target = $region12
      $region11: #{tpu_custom_call.1} parent=5 // pred_region
        %s194 = ssub.s32 %s23, 1
        // Predicated region
        $region13: #{tpu_custom_call.1} parent=11 // pred_check
          %p195 = pneg %p84
        $region14: #{tpu_custom_call.1} parent=11 // pred_check_branch
          %197 = sbr.rel (%p195) target = $region16
        $region15: #{tpu_custom_call.1} parent=11 // pred_region
          %s199 = ssub.s32 2048, 2048
          %200 = vsyncadd [#allocation7], %s199
          %s201 = sshll.u32 [#allocation6], 4
          %s202 = int_to_ptr.vmem [resolvable:$true] %s201
          %207 = dma.hbm_to_vmem [thread:$0]  %s1, 2048, %s202, [#allocation7], 128, 128, 8
        $region16: #{tpu_custom_call.1} parent=11 // pred_fallthru
          _
        // Predicated region
        $region17: #{tpu_custom_call.1} parent=11 // pred_check
          %p208 = pneg %p105
        $region18: #{tpu_custom_call.1} parent=11 // pred_check_branch
          %210 = sbr.rel (%p208) target = $region20
        $region19: #{tpu_custom_call.1} parent=11 // pred_region
          %s212 = ssub.s32 1024, 1024
          %213 = vsyncadd [#allocation7], %s212
          %s214 = sshll.u32 [#allocation8], 4
          %s215 = int_to_ptr.vmem [resolvable:$true] %s214
          %220 = dma.hbm_to_vmem [thread:$0]  %s2, 1024, %s215, [#allocation7], 64, 64, 4
        $region20: #{tpu_custom_call.1} parent=11 // pred_fallthru
          _
        // Predicated region
        $region21: #{tpu_custom_call.1} parent=11 // pred_check
          %p221 = pneg %p126
        $region22: #{tpu_custom_call.1} parent=11 // pred_check_branch
          %223 = sbr.rel (%p221) target = $region24
        $region23: #{tpu_custom_call.1} parent=11 // pred_region
          %s225 = ssub.s32 256, 256
          %226 = vsyncadd [#allocation10], %s225
          %s227 = sshll.u32 [#allocation9], 4
          %s228 = int_to_ptr.vmem [resolvable:$true] %s227
          %233 = dma.hbm_to_vmem [thread:$0]  %s3, 256, %s228, [#allocation10], 128, 128, 8
        $region24: #{tpu_custom_call.1} parent=11 // pred_fallthru
          _
      $region12: #{tpu_custom_call.1} parent=5 // pred_fallthru
        _
      %p234 = scmp.lt.s32.totalorder %s23, 2
      // Predicated region
      $region25: #{tpu_custom_call.1} parent=5 // pred_check
        %p235 = pneg %p234
      $region26: #{tpu_custom_call.1} parent=5 // pred_check_branch
        %237 = sbr.rel (%p235) target = $region28
      $region27: #{tpu_custom_call.1} parent=5 // pred_region
        // Predicated region
        $region29: #{tpu_custom_call.1} parent=27 // pred_check
          %p238 = pneg %p57
        $region30: #{tpu_custom_call.1} parent=27 // pred_check_branch
          %240 = sbr.rel (%p238) target = $region32
        $region31: #{tpu_custom_call.1} parent=27 // pred_region
          %s241 = sand.u32 %s47, 1
          %s242 = scalar_lea.sflag [#allocation4], %s241
          %s243 = sand.u32 %s47, 1
          %s244 = smul.addr %s243, 8
          %s245 = scalar_lea.vmem [#allocation3], %s244
          %s246 = smul.u32 2, %s31
          %s248 = ssub.s32 128, 128
          %249 = vsyncadd %s242, %s248
          %s250 = smul.addr %s30, 2
          %s251 = sadd.s32 %s246, %s250
          %s252 = smul.addr %s251, 64
          %s253 = scalar_lea.hbm %s0, %s252
          %s254 = sshll.u32 %s245, 4
          %s255 = int_to_ptr.vmem [resolvable:$true] %s254
          %260 = dma.hbm_to_vmem [thread:$0]  %s253, 128, %s255, %s242, 64, 64, 4
        $region32: #{tpu_custom_call.1} parent=27 // pred_fallthru
          _
      $region28: #{tpu_custom_call.1} parent=5 // pred_fallthru
        _
      %p261 = scmp.le.s32.totalorder 1, %s23
      %p262 = scmp.lt.s32.totalorder %s23, 3
      %p263 = pnand %p261, %p262
      %p264 = pneg %p263
      // Predicated region
      $region33: #{tpu_custom_call.1} parent=5 // pred_check
        _
      $region34: #{tpu_custom_call.1} parent=5 // pred_check_branch
        %266 = sbr.rel (%p263) target = $region36
      $region35: #{tpu_custom_call.1} parent=5 // pred_region
        %s267 = ssub.s32 %s23, 1
        %s268 = sand.u32 %s50, 1
        %s269 = scalar_lea.sflag [#allocation4], %s268
        %s270 = sand.u32 %s50, 1
        %s271 = smul.addr %s270, 8
        %s272 = scalar_lea.vmem [#allocation3], %s271
        // Predicated region
        $region37: #{tpu_custom_call.1} parent=35 // pred_check
          %p273 = pneg %p63
        $region38: #{tpu_custom_call.1} parent=35 // pred_check_branch
          %275 = sbr.rel (%p273) target = $region40
        $region39: #{tpu_custom_call.1} parent=35 // pred_region
          %276 = dma.done %s269, 128
        $region40: #{tpu_custom_call.1} parent=35 // pred_fallthru
          _
        // Predicated region
        $region41: #{tpu_custom_call.1} parent=35 // pred_check
          %p277 = pneg %p84
        $region42: #{tpu_custom_call.1} parent=35 // pred_check_branch
          %279 = sbr.rel (%p277) target = $region44
        $region43: #{tpu_custom_call.1} parent=35 // pred_region
          %280 = dma.done [#allocation7], 2048
        $region44: #{tpu_custom_call.1} parent=35 // pred_fallthru
          _
        // Predicated region
        $region45: #{tpu_custom_call.1} parent=35 // pred_check
          %p281 = pneg %p105
        $region46: #{tpu_custom_call.1} parent=35 // pred_check_branch
          %283 = sbr.rel (%p281) target = $region48
        $region47: #{tpu_custom_call.1} parent=35 // pred_region
          %284 = dma.done [#allocation7], 1024
        $region48: #{tpu_custom_call.1} parent=35 // pred_fallthru
          _
        // Predicated region
        $region49: #{tpu_custom_call.1} parent=35 // pred_check
          %p285 = pneg %p126
        $region50: #{tpu_custom_call.1} parent=35 // pred_check_branch
          %287 = sbr.rel (%p285) target = $region52
        $region51: #{tpu_custom_call.1} parent=35 // pred_region
          %288 = dma.done [#allocation10], 256
        $region52: #{tpu_custom_call.1} parent=35 // pred_fallthru
          _
        %s289 = sand.u32 %s50, 1
        %s290 = scalar_lea.sflag [#allocation4], %s289
        %s291 = sand.u32 %s50, 1
        %s292 = smul.addr %s291, 8
        %s293 = scalar_lea.vmem [#allocation3], %s292
        %p294 = pneg %p63
        %p295 = pneg %p60
        %p296 = pneg %p84
        %p297 = pneg %p81
        %p298 = pneg %p105
        %p299 = pneg %p102
        %p300 = pneg %p126
        %p301 = pneg %p123
        %p302 = pneg %p154
        %p303 = pneg %p151
        %s304 = sand.u32 %s141, 1
        %s305 = scalar_lea.sflag [#allocation5], %s304
        %s306 = sand.u32 %s141, 1
        %s307 = smul.addr %s306, 16
        %s308 = scalar_lea.vmem [#allocation11], %s307
        %p309 = pneg %p180
        %p310 = pneg %p177
        %s311 = sand.u32 %s167, 1
        %s312 = scalar_lea.sflag [#allocation13], %s311
        %s313 = sand.u32 %s167, 1
        %s314 = scalar_lea.vmem [#allocation12], %s313
        %s315 = smul.u32 2, %s33
        %s316 = smul.u32 2, %s33
        %v318 = vld [vmem:[%s272] sm:$0xf]
        %v319 = vld [vmem:[%s272 + $0x4] sm:$0xf]
        %v320 = vld [vmem:[#allocation6] sm:$0xff]
        %v321 = vld [vmem:[#allocation6 + $0x8] sm:$0xff]
        %v322 = vld [vmem:[#allocation6 + $0x10] sm:$0xff]
        %v323 = vld [vmem:[#allocation6 + $0x18] sm:$0xff]
        %v324 = vld [vmem:[#allocation6 + $0x20] sm:$0xff]
        %v325 = vld [vmem:[#allocation6 + $0x28] sm:$0xff]
        %v326 = vld [vmem:[#allocation6 + $0x30] sm:$0xff]
        %v327 = vld [vmem:[#allocation6 + $0x38] sm:$0xff]
        %v328 = vld [vmem:[#allocation6 + $0x40] sm:$0xff]
        %v329 = vld [vmem:[#allocation6 + $0x48] sm:$0xff]
        %v330 = vld [vmem:[#allocation6 + $0x50] sm:$0xff]
        %v331 = vld [vmem:[#allocation6 + $0x58] sm:$0xff]
        %v332 = vld [vmem:[#allocation6 + $0x60] sm:$0xff]
        %v333 = vld [vmem:[#allocation6 + $0x68] sm:$0xff]
        %v334 = vld [vmem:[#allocation6 + $0x70] sm:$0xff]
        %v335 = vld [vmem:[#allocation6 + $0x78] sm:$0xff]
        %v338 = vunpack.c.l.b16 %v318
        %v339 = vunpack.c.l.b16 %v319
        %v340 = vpack.c.b16 %v339, %v338
        %v358 = vunpack.c.l.b16 %v320
        %v359 = vunpack.c.h.b16 %v320
        %v360 = vunpack.c.l.b16 %v321
        %v361 = vunpack.c.h.b16 %v321
        %v362 = vunpack.c.l.b16 %v322
        %v363 = vunpack.c.h.b16 %v322
        %v364 = vunpack.c.l.b16 %v323
        %v365 = vunpack.c.h.b16 %v323
        %v366 = vunpack.c.l.b16 %v324
        %v367 = vunpack.c.h.b16 %v324
        %v368 = vunpack.c.l.b16 %v325
        %v369 = vunpack.c.h.b16 %v325
        %v370 = vunpack.c.l.b16 %v326
        %v371 = vunpack.c.h.b16 %v326
        %v372 = vunpack.c.l.b16 %v327
        %v373 = vunpack.c.h.b16 %v327
        %v374 = vunpack.c.l.b16 %v328
        %v375 = vunpack.c.h.b16 %v328
        %v376 = vunpack.c.l.b16 %v329
        %v377 = vunpack.c.h.b16 %v329
        %v378 = vunpack.c.l.b16 %v330
        %v379 = vunpack.c.h.b16 %v330
        %v380 = vunpack.c.l.b16 %v331
        %v381 = vunpack.c.h.b16 %v331
        %v382 = vunpack.c.l.b16 %v332
        %v383 = vunpack.c.h.b16 %v332
        %v384 = vunpack.c.l.b16 %v333
        %v385 = vunpack.c.h.b16 %v333
        %v386 = vunpack.c.l.b16 %v334
        %v387 = vunpack.c.h.b16 %v334
        %v388 = vunpack.c.l.b16 %v335
        %v389 = vunpack.c.h.b16 %v335
        %v390 = vpack.c.b16 %v360, %v358
        %v391 = vpack.c.b16 %v361, %v359
        %v392 = vpack.c.b16 %v364, %v362
        %v393 = vpack.c.b16 %v365, %v363
        %v394 = vpack.c.b16 %v368, %v366
        %v395 = vpack.c.b16 %v369, %v367
        %v396 = vpack.c.b16 %v372, %v370
        %v397 = vpack.c.b16 %v373, %v371
        %v398 = vpack.c.b16 %v376, %v374
        %v399 = vpack.c.b16 %v377, %v375
        %v400 = vpack.c.b16 %v380, %v378
        %v401 = vpack.c.b16 %v381, %v379
        %v402 = vpack.c.b16 %v384, %v382
        %v403 = vpack.c.b16 %v385, %v383
        %v404 = vpack.c.b16 %v388, %v386
        %v405 = vpack.c.b16 %v389, %v387
        %422 = vmatprep.subr.bf16.mxu0 %v391
        %423 = vmatpush1.bf16.msra.mxu0 %v390
        %424 = vmatprep.subr.bf16.mxu0 %v393
        %425 = vmatpush1.bf16.msra.mxu0 %v392
        %426 = vmatprep.subr.bf16.mxu0 %v395
        %427 = vmatpush1.bf16.msra.mxu0 %v394
        %428 = vmatprep.subr.bf16.mxu0 %v397
        %429 = vmatpush1.bf16.msra.mxu0 %v396
        %430 = vmatprep.subr.bf16.mxu0 %v399
        %431 = vmatpush1.bf16.msra.mxu0 %v398
        %432 = vmatprep.subr.bf16.mxu0 %v401
        %433 = vmatpush1.bf16.msra.mxu0 %v400
        %434 = vmatprep.subr.bf16.mxu0 %v403
        %435 = vmatpush1.bf16.msra.mxu0 %v402
        %436 = vmatprep.subr.bf16.mxu0 %v405
        %437 = vmatpush1.bf16.msra.mxu0 %v404
        %438 = vmatprep.subr.bf16.mxu0 0
        %439 = vmatpush1.bf16.msra.mxu0 0
        %440 = vmatprep.subr.bf16.mxu0 0
        %441 = vmatpush1.bf16.msra.mxu0 0
        %442 = vmatprep.subr.bf16.mxu0 0
        %443 = vmatpush1.bf16.msra.mxu0 0
        %444 = vmatprep.subr.bf16.mxu0 0
        %445 = vmatpush1.bf16.msra.mxu0 0
        %446 = vmatprep.subr.bf16.mxu0 0
        %447 = vmatpush1.bf16.msra.mxu0 0
        %448 = vmatprep.subr.bf16.mxu0 0
        %449 = vmatpush1.bf16.msra.mxu0 0
        %450 = vmatprep.subr.bf16.mxu0 0
        %451 = vmatpush1.bf16.msra.mxu0 0
        %452 = vmatprep.subr.bf16.mxu0 0
        %453 = vmatpush1.bf16.msra.mxu0 0
        %454 = vmatprep.mubr.bf16.mxu0 0
        %455 = vmatmul.mubr.bf16.gmra.mrb[0].mxu0 %v340
        %v456 = vpop.f32.mrb[0].mxu0
        %v457 = vadd.f32 0.0, %v456
        %v458 = vpop.f32.mrb[0].mxu0
        %v459 = vadd.f32 0.0, %v458
        %v460 = vpop.f32.mrb[0].mxu0
        %v461 = vadd.f32 0.0, %v460
        %v462 = vpop.f32.mrb[0].mxu0
        %v463 = vadd.f32 0.0, %v462
        %464 = vdwg.mxu0
        %v465 = vmul.f32 %v457, %v457
        %v466 = vmul.f32 %v461, %v461
        %v467 = vmul.f32 %v459, %v459
        %v468 = vmul.f32 %v463, %v463
        %v469 = vadd.f32 %v465, %v467
        %v470 = vadd.f32 %v466, %v468
        %v471 = vrsqrt.pop %v469
        %v472 = vmul.f32 %v469, %v471
        %vm473 = vcmp.eq.f32.partialorder %v469, inf
        %v474 = vsel %vm473, %v469, %v472
        %vm475 = vcmp.eq.f32.partialorder %v469, 0.0
        %v476 = vand.u32 %v469, 2147483648
        %v477 = vsel %vm475, %v476, %v474
        %v478 = vrsqrt.pop %v470
        %v479 = vmul.f32 %v470, %v478
        %vm480 = vcmp.eq.f32.partialorder %v470, inf
        %v481 = vsel %vm480, %v470, %v479
        %vm482 = vcmp.eq.f32.partialorder %v470, 0.0
        %v483 = vand.u32 %v470, 2147483648
        %v484 = vsel %vm482, %v483, %v481
        %v485 = vpack.c.bf16 %v484, %v477
        %v486 = vld [vmem:[#allocation8] sm:$0xf]
        %v487 = vld [vmem:[#allocation8 + $0x4] sm:$0xf]
        %v488 = vld [vmem:[#allocation8 + $0x8] sm:$0xf]
        %v489 = vld [vmem:[#allocation8 + $0xc] sm:$0xf]
        %v490 = vld [vmem:[#allocation8 + $0x10] sm:$0xf]
        %v491 = vld [vmem:[#allocation8 + $0x14] sm:$0xf]
        %v492 = vld [vmem:[#allocation8 + $0x18] sm:$0xf]
        %v493 = vld [vmem:[#allocation8 + $0x1c] sm:$0xf]
        %v494 = vld [vmem:[#allocation8 + $0x20] sm:$0xf]
        %v495 = vld [vmem:[#allocation8 + $0x24] sm:$0xf]
        %v496 = vld [vmem:[#allocation8 + $0x28] sm:$0xf]
        %v497 = vld [vmem:[#allocation8 + $0x2c] sm:$0xf]
        %v498 = vld [vmem:[#allocation8 + $0x30] sm:$0xf]
        %v499 = vld [vmem:[#allocation8 + $0x34] sm:$0xf]
        %v500 = vld [vmem:[#allocation8 + $0x38] sm:$0xf]
        %v501 = vld [vmem:[#allocation8 + $0x3c] sm:$0xf]
        %v518 = vunpack.c.l.b16 %v486
        %v519 = vunpack.c.l.b16 %v487
        %v520 = vunpack.c.l.b16 %v488
        %v521 = vunpack.c.l.b16 %v489
        %v522 = vunpack.c.l.b16 %v490
        %v523 = vunpack.c.l.b16 %v491
        %v524 = vunpack.c.l.b16 %v492
        %v525 = vunpack.c.l.b16 %v493
        %v526 = vunpack.c.l.b16 %v494
        %v527 = vunpack.c.l.b16 %v495
        %v528 = vunpack.c.l.b16 %v496
        %v529 = vunpack.c.l.b16 %v497
        %v530 = vunpack.c.l.b16 %v498
        %v531 = vunpack.c.l.b16 %v499
        %v532 = vunpack.c.l.b16 %v500
        %v533 = vunpack.c.l.b16 %v501
        %v534 = vpack.c.b16 %v519, %v518
        %v535 = vpack.c.b16 %v521, %v520
        %v536 = vpack.c.b16 %v523, %v522
        %v537 = vpack.c.b16 %v525, %v524
        %v538 = vpack.c.b16 %v527, %v526
        %v539 = vpack.c.b16 %v529, %v528
        %v540 = vpack.c.b16 %v531, %v530
        %v541 = vpack.c.b16 %v533, %v532
        %550 = vmatprep.subr.bf16.mxu0 0
        %551 = vmatpush1.bf16.msra.mxu0 %v534
        %552 = vmatprep.subr.bf16.mxu0 0
        %553 = vmatpush1.bf16.msra.mxu0 %v535
        %554 = vmatprep.subr.bf16.mxu0 0
        %555 = vmatpush1.bf16.msra.mxu0 %v536
        %556 = vmatprep.subr.bf16.mxu0 0
        %557 = vmatpush1.bf16.msra.mxu0 %v537
        %558 = vmatprep.subr.bf16.mxu0 0
        %559 = vmatpush1.bf16.msra.mxu0 %v538
        %560 = vmatprep.subr.bf16.mxu0 0
        %561 = vmatpush1.bf16.msra.mxu0 %v539
        %562 = vmatprep.subr.bf16.mxu0 0
        %563 = vmatpush1.bf16.msra.mxu0 %v540
        %564 = vmatprep.subr.bf16.mxu0 0
        %565 = vmatpush1.bf16.msra.mxu0 %v541
        %566 = vmatprep.subr.bf16.mxu0 0
        %567 = vmatpush1.bf16.msra.mxu0 0
        %568 = vmatprep.subr.bf16.mxu0 0
        %569 = vmatpush1.bf16.msra.mxu0 0
        %570 = vmatprep.subr.bf16.mxu0 0
        %571 = vmatpush1.bf16.msra.mxu0 0
        %572 = vmatprep.subr.bf16.mxu0 0
        %573 = vmatpush1.bf16.msra.mxu0 0
        %574 = vmatprep.subr.bf16.mxu0 0
        %575 = vmatpush1.bf16.msra.mxu0 0
        %576 = vmatprep.subr.bf16.mxu0 0
        %577 = vmatpush1.bf16.msra.mxu0 0
        %578 = vmatprep.subr.bf16.mxu0 0
        %579 = vmatpush1.bf16.msra.mxu0 0
        %580 = vmatprep.subr.bf16.mxu0 0
        %581 = vmatpush1.bf16.msra.mxu0 0
        %582 = vmatprep.mubr.bf16.mxu0 0
        %583 = vmatmul.mubr.bf16.gmra.mrb[0].mxu0 %v485
        %v584 = vpop.f32.mrb[0].mxu0
        %v585 = vadd.f32 0.0, %v584
        %v586 = vpop.f32.mrb[0].mxu0
        %v587 = vpop.f32.mrb[0].mxu0
        %v588 = vadd.f32 0.0, %v587
        %v589 = vpop.f32.mrb[0].mxu0
        %590 = vdwg.mxu0
        %p591 = scmp.eq.s32.totalorder %s33, 0
        // Predicated region
        $region53: #{tpu_custom_call.1} parent=35 // pred_check
          %p592 = pneg %p591
        $region54: #{tpu_custom_call.1} parent=35 // pred_check_branch
          %594 = sbr.rel (%p592) target = $region56
        $region55: #{tpu_custom_call.1} parent=35 // pred_region
          %595 = vst [vmem:[#allocation2] sm:$0x1] %v585
        $region56: #{tpu_custom_call.1} parent=35 // pred_fallthru
          _
        %v596 = vld [vmem:[#allocation2] sm:$0x1]
        %v597 = vlaneseq
        %v598 = vshrl.u32 %v597, 7
        %v599 = vadd.s32 %v598, 8
        %v600 = vcvt.s32.f32 %v598
        %v601 = vcvt.s32.f32 %v599
        %v602 = vadd.f32 %v600, 1.0
        %v603 = vadd.f32 %v601, 1.0
        %v604 = vmul.f32 %v602, -0.025317809
        %v605 = vmul.f32 %v603, -0.025317809
        %v606 = vmul.f32 %v604, 1.442695
        %v607 = vpow.pop %v606
        %v608 = vmul.f32 %v605, 1.442695
        %v609 = vpow.pop %v608
        %v610 = vld [vmem:[#allocation9] sm:$0xff]
        %v611 = vld [vmem:[#allocation9 + $0x8] sm:$0xff]
        %v613 = vlaneseq
        %v614 = vshrl.u32 %v613, 7
        %v615 = vsub.s32 0, %v614
        %v616 = vrot.slane %v596, %v615
        %v618 = vmul.f32 %v607, %v616
        %v619 = vmul.f32 %v609, %v616
        %vm620 = vcmask 130048
        %v622 = vsel %vm620, %v610, 0
        %v625 = vsel %vm620, %v611, 0
        %627 = vmatprep.subr.mxu0 0.0
        %628 = vmatpush1.msra.mxu0 %v585
        %629 = vmatprep.subr.mxu0 0.0
        %630 = vmatpush1.msra.mxu0 %v588
        %631 = vmatprep.subr.mxu0 0.0
        %632 = vmatpush1.msra.mxu0 0.0
        %633 = vmatprep.subr.mxu0 0.0
        %634 = vmatpush1.msra.mxu0 0.0
        %635 = vmatprep.subr.mxu0 0.0
        %636 = vmatpush1.msra.mxu0 0.0
        %637 = vmatprep.subr.mxu0 0.0
        %638 = vmatpush1.msra.mxu0 0.0
        %639 = vmatprep.subr.mxu0 0.0
        %640 = vmatpush1.msra.mxu0 0.0
        %641 = vmatprep.subr.mxu0 0.0
        %642 = vmatpush1.msra.mxu0 0.0
        %643 = vmatprep.subr.mxu0 0.0
        %644 = vmatpush1.msra.mxu0 0.0
        %645 = vmatprep.subr.mxu0 0.0
        %646 = vmatpush1.msra.mxu0 0.0
        %647 = vmatprep.subr.mxu0 0.0
        %648 = vmatpush1.msra.mxu0 0.0
        %649 = vmatprep.subr.mxu0 0.0
        %650 = vmatpush1.msra.mxu0 0.0
        %651 = vmatprep.subr.mxu0 0.0
        %652 = vmatpush1.msra.mxu0 0.0
        %653 = vmatprep.subr.mxu0 0.0
        %654 = vmatpush1.msra.mxu0 0.0
        %655 = vmatprep.subr.mxu0 0.0
        %656 = vmatpush1.msra.mxu0 0.0
        %657 = vmatprep.subr.mxu0 0.0
        %658 = vmatpush1.msra.mxu0 0.0
        %659 = vmatprep.subr.mxu0 0.0
        %660 = vmatpush1.msra.mxu0 0.0
        %661 = vmatprep.subr.mxu0 0.0
        %662 = vmatpush1.msra.mxu0 0.0
        %663 = vmatprep.subr.mxu0 0.0
        %664 = vmatpush1.msra.mxu0 0.0
        %665 = vmatprep.subr.mxu0 0.0
        %666 = vmatpush1.msra.mxu0 0.0
        %667 = vmatprep.subr.mxu0 0.0
        %668 = vmatpush1.msra.mxu0 0.0
        %669 = vmatprep.subr.mxu0 0.0
        %670 = vmatpush1.msra.mxu0 0.0
        %671 = vmatprep.subr.mxu0 0.0
        %672 = vmatpush1.msra.mxu0 0.0
        %673 = vmatprep.subr.mxu0 0.0
        %674 = vmatpush1.msra.mxu0 0.0
        %675 = vmatprep.subr.mxu0 0.0
        %676 = vmatpush1.msra.mxu0 0.0
        %677 = vmatprep.subr.mxu0 0.0
        %678 = vmatpush1.msra.mxu0 0.0
        %679 = vmatprep.subr.mxu0 0.0
        %680 = vmatpush1.msra.mxu0 0.0
        %681 = vmatprep.subr.mxu0 0.0
        %682 = vmatpush1.msra.mxu0 0.0
        %683 = vmatprep.subr.mxu0 0.0
        %684 = vmatpush1.msra.mxu0 0.0
        %685 = vmatprep.subr.mxu0 0.0
        %686 = vmatpush1.msra.mxu0 0.0
        %687 = vmatprep.subr.mxu0 0.0
        %688 = vmatpush1.msra.mxu0 0.0
        %689 = vmatprep.subr.mxu0 0.0
        %690 = vmatpush1.msra.mxu0 0.0
        %691 = vmatprep.mubr.f32.mxu0 0.0
        %692 = vmatmul.mubr.f32.gmra.mrb[0].mxu0 %v622
        %v693 = vpop.f32.mrb[0].mxu0
        %v694 = vadd.f32 %v618, %v693
        %v695 = vpop.f32.mrb[0].mxu0
        %696 = vmatprep.mubr.f32.mxu0 0.0
        %697 = vmatmul.mubr.f32.gmra.mrb[0].mxu0 %v625
        %v698 = vpop.f32.mrb[0].mxu0
        %v699 = vadd.f32 %v619, %v698
        %v700 = vpop.f32.mrb[0].mxu0
        %701 = vdwg.mxu0
        %702 = vst [vmem:[#allocation2 - $0x7] sm:$0x80] %v699
        %v703 = vadd.f32 %v694, 1e-06
        %v704 = vadd.f32 %v699, 1e-06
        %v705 = vlog2.pop %v703
        %v706 = vmul.f32 %v705, 0.6931472
        %v707 = vlog2.pop %v704
        %v708 = vmul.f32 %v707, 0.6931472
        %v709 = vmul.f32 %v706, -0.98
        %v710 = vmul.f32 %v708, -0.98
        %v711 = vmul.f32 %v709, 1.442695
        %v712 = vpow.pop %v711
        %v713 = vmul.f32 %v710, 1.442695
        %v714 = vpow.pop %v713
        %v715 = vmul.f32 %v585, %v712
        %v716 = vmul.f32 %v588, %v714
        %v717 = vadd.f32 %v715, 2.0
        %v718 = vadd.f32 %v716, 2.0
        %v719 = vrsqrt.pop %v717
        %v720 = vmul.f32 %v717, %v719
        %vm721 = vcmp.eq.f32.partialorder %v717, inf
        %v722 = vsel %vm721, %v717, %v720
        %vm723 = vcmp.eq.f32.partialorder %v717, 0.0
        %v724 = vand.u32 %v717, 2147483648
        %v725 = vsel %vm723, %v724, %v722
        %v726 = vrsqrt.pop %v718
        %v727 = vmul.f32 %v718, %v726
        %vm728 = vcmp.eq.f32.partialorder %v718, inf
        %v729 = vsel %vm728, %v718, %v727
        %vm730 = vcmp.eq.f32.partialorder %v718, 0.0
        %v731 = vand.u32 %v718, 2147483648
        %v732 = vsel %vm730, %v731, %v729
        %v733 = vsub.f32 %v725, 1.4142135
        %v734 = vsub.f32 %v732, 1.4142135
        %735 = vst [vmem:[%s308] sm:$0xff] %v733
        %736 = vst [vmem:[%s308 + $0x8] sm:$0xff] %v734
        // Predicated region
        $region57: #{tpu_custom_call.1} parent=35 // pred_check
          %p737 = pneg %p591
        $region58: #{tpu_custom_call.1} parent=35 // pred_check_branch
          %739 = sbr.rel (%p737) target = $region60
        $region59: #{tpu_custom_call.1} parent=35 // pred_region
          %740 = vst [vmem:[%s314 - $0x7] sm:$0x80] %v699
        $region60: #{tpu_custom_call.1} parent=35 // pred_fallthru
          _
        %s741 = sand.u32 %s141, 1
        %s742 = scalar_lea.sflag [#allocation5], %s741
        %s743 = sand.u32 %s141, 1
        %s744 = smul.addr %s743, 16
        %s745 = scalar_lea.vmem [#allocation11], %s744
        %s746 = sand.u32 %s167, 1
        %s747 = scalar_lea.sflag [#allocation13], %s746
        %s748 = sand.u32 %s167, 1
        %s749 = scalar_lea.vmem [#allocation12], %s748
        // Predicated region
        $region61: #{tpu_custom_call.1} parent=35 // pred_check
          %p750 = pneg %p151
        $region62: #{tpu_custom_call.1} parent=35 // pred_check_branch
          %752 = sbr.rel (%p750) target = $region64
        $region63: #{tpu_custom_call.1} parent=35 // pred_region
          %s753 = smul.u32 2, %s33
          %s755 = ssub.s32 256, 256
          %756 = vsyncadd %s742, %s755
          %s757 = smul.addr %s32, 2
          %s758 = sadd.s32 %s753, %s757
          %s759 = smul.addr %s758, 128
          %s760 = scalar_lea.hbm %s4, %s759
          %s761 = sshll.u32 %s745, 4
          %s762 = int_to_ptr.vmem [resolvable:$true] %s761
          %767 = dma.vmem_to_hbm [thread:$0]  %s762, 256, %s760, %s742, 128, 128, 8
        $region64: #{tpu_custom_call.1} parent=35 // pred_fallthru
          _
        // Predicated region
        $region65: #{tpu_custom_call.1} parent=35 // pred_check
          %p768 = pneg %p177
        $region66: #{tpu_custom_call.1} parent=35 // pred_check_branch
          %770 = sbr.rel (%p768) target = $region68
        $region67: #{tpu_custom_call.1} parent=35 // pred_region
          %s772 = ssub.s32 16, 16
          %773 = vsyncadd %s747, %s772
          %s774 = smul.addr %s32, 16
          %s775 = scalar_lea.hbm %s5, %s774
          %s777 = sshll.u32 %s749, 4
          %s778 = int_to_ptr.vmem [resolvable:$true] %s777
          %780 = dma.vmem_to_hbm [thread:$0]  %s778, 16, %s775, %s747
        $region68: #{tpu_custom_call.1} parent=35 // pred_fallthru
          _
      $region36: #{tpu_custom_call.1} parent=5 // pred_fallthru
        _
      %p781 = scmp.le.s32.totalorder 2, %s23
      // Predicated region
      $region69: #{tpu_custom_call.1} parent=5 // pred_check
        %p782 = pneg %p781
      $region70: #{tpu_custom_call.1} parent=5 // pred_check_branch
        %784 = sbr.rel (%p782) target = $region72
      $region71: #{tpu_custom_call.1} parent=5 // pred_region
        %s785 = ssub.s32 %s23, 2
        // Predicated region
        $region73: #{tpu_custom_call.1} parent=71 // pred_check
          %p786 = pneg %p157
        $region74: #{tpu_custom_call.1} parent=71 // pred_check_branch
          %788 = sbr.rel (%p786) target = $region76
        $region75: #{tpu_custom_call.1} parent=71 // pred_region
          %s789 = sand.u32 %s142, 1
          %s790 = scalar_lea.sflag [#allocation5], %s789
          %s791 = sand.u32 %s142, 1
          %s792 = smul.addr %s791, 16
          %s793 = scalar_lea.vmem [#allocation11], %s792
          %794 = dma.done %s790, 256
        $region76: #{tpu_custom_call.1} parent=71 // pred_fallthru
          _
        // Predicated region
        $region77: #{tpu_custom_call.1} parent=71 // pred_check
          %p795 = pneg %p183
        $region78: #{tpu_custom_call.1} parent=71 // pred_check_branch
          %797 = sbr.rel (%p795) target = $region80
        $region79: #{tpu_custom_call.1} parent=71 // pred_region
          %s798 = sand.u32 %s168, 1
          %s799 = scalar_lea.sflag [#allocation13], %s798
          %s800 = sand.u32 %s168, 1
          %s801 = scalar_lea.vmem [#allocation12], %s800
          %802 = dma.done %s799, 16
        $region80: #{tpu_custom_call.1} parent=71 // pred_fallthru
          _
      $region72: #{tpu_custom_call.1} parent=5 // pred_fallthru
        _
    $region6: #{tpu_custom_call.1} parent=1 // loop_footer
      %s27 = sadd.s32 1, %s23
    $region7: #{tpu_custom_call.1} parent=1 // loop_footer_branch
      %22 = sbr.rel target = $region3
    $region8: #{tpu_custom_call.1} parent=1 // loop_exit
      _
    %803 = vsyncpa [#allocation4], 1
    %s804 = scalar_lea.sflag [#allocation4], 1
    %805 = vsyncpa %s804, 1
    %806 = vsyncpa [#allocation7], 1
    %807 = vsyncpa [#allocation10], 1
    %808 = vsyncpa [#allocation5], 1
    %s809 = scalar_lea.sflag [#allocation5], 1
    %810 = vsyncpa %s809, 1
    %811 = vsyncpa [#allocation13], 1
    %s812 = scalar_lea.sflag [#allocation13], 1
    %813 = vsyncpa %s812, 1

</llo_original>
